<compile_context>
chip_gen: v5e
topology: v5e:2x2
jax: 0.10.0
libtpu: 0.0.40
codegen_flags: <defaults>
</compile_context>

<pallas_src>
import math

import jax
import jax.numpy as jnp
import numpy as np
from jax.experimental import pallas as pl
from jax.experimental.pallas import tpu as pltpu

NEG_SLOPE = 0.01  # F.leaky_relu default negative_slope


# ---------------------------------------------------------------------------
# Kernel 1: fused projections   z = h @ W ;  [s | d] = z @ [a_src | a_dst]
# ---------------------------------------------------------------------------
def _proj_kernel(h_ref, w_ref, a_ref, z_ref, sd_ref):
    # TODO(synk): at production sizes cast h/W (and z/a) to bf16 here while
    # keeping preferred_element_type=f32 to hit the bf16 MXU path; kept f32 at
    # this toy scale so the check against the f32 reference stays tight.
    z = jnp.dot(h_ref[...], w_ref[...], preferred_element_type=jnp.float32)
    z_ref[...] = z
    sd_ref[...] = jnp.dot(z, a_ref[...], preferred_element_type=jnp.float32)


def fused_projection(h_pad, W, A, *, tm):
    Np, Fin = h_pad.shape
    Fout = W.shape[1]
    return pl.pallas_call(
        _proj_kernel,
        out_shape=(
            jax.ShapeDtypeStruct((Np, Fout), jnp.float32),
            jax.ShapeDtypeStruct((Np, 2), jnp.float32),
        ),
        grid=(Np // tm,),
        in_specs=[
            pl.BlockSpec((tm, Fin), lambda i: (i, 0)),
            pl.BlockSpec((Fin, Fout), lambda i: (0, 0)),
            pl.BlockSpec((Fout, 2), lambda i: (0, 0)),
        ],
        out_specs=(
            pl.BlockSpec((tm, Fout), lambda i: (i, 0)),
            pl.BlockSpec((tm, 2), lambda i: (i, 0)),
        ),
        compiler_params=pltpu.CompilerParams(dimension_semantics=("parallel",)),
    )(h_pad, W, A)


# ---------------------------------------------------------------------------
# Kernel 2: masked edge-attention + neighbourhood aggregation
#   e[i, j]  = leaky_relu(d[i] + s[j])   masked by adj[i, j]
#   out[i]   = softmax_j(e[i, :]) @ z
# Tiled over destination rows; sources (padded N) live on lanes.
# ---------------------------------------------------------------------------
def _attn_kernel(d_ref, s_ref, z_ref, adj_ref, o_ref):
    d = d_ref[...]                                   # (tm, 1)   dst scores
    s = s_ref[...]                                   # (1, Np)   src scores
    adj = adj_ref[...]                               # (tm, Np)  {0,1} edge mask
    pre = d + s                                      # (tm, Np)
    e = jnp.where(pre > 0, pre, NEG_SLOPE * pre)     # leaky_relu
    e = jnp.where(adj > 0, e, -1e30)                 # mask non-edges / padding
    m = jnp.max(e, axis=-1, keepdims=True)
    p = jnp.exp(e - m) * adj                         # unnormalized alpha (exact 0 off-graph)
    denom = jnp.maximum(jnp.sum(p, axis=-1, keepdims=True), 1e-30)
    # Normalize after the matmul: divide the small (tm, Fout) result, not (tm, Np).
    o_ref[...] = (
        jnp.dot(p, z_ref[...], preferred_element_type=jnp.float32) / denom
    )


def masked_attention(d_col, s_row, z_all, adj_pad, *, tm):
    Np, Fout = z_all.shape
    return pl.pallas_call(
        _attn_kernel,
        out_shape=jax.ShapeDtypeStruct((Np, Fout), jnp.float32),
        grid=(Np // tm,),
        in_specs=[
            pl.BlockSpec((tm, 1), lambda i: (i, 0)),
            pl.BlockSpec((1, Np), lambda i: (0, 0)),
            pl.BlockSpec((Np, Fout), lambda i: (0, 0)),
            pl.BlockSpec((tm, Np), lambda i: (i, 0)),
        ],
        out_specs=pl.BlockSpec((tm, Fout), lambda i: (i, 0)),
        compiler_params=pltpu.CompilerParams(dimension_semantics=("parallel",)),
    )(d_col, s_row, z_all, adj_pad)


# ---------------------------------------------------------------------------
# Full GATLayer forward
# ---------------------------------------------------------------------------
def gat_layer(h, adj, W, a_vec, *, tm=128):
    """h: (N, in_dim) node features; adj[dst, src]: (N, N) 0/1 edge mask."""
    N, _ = h.shape
    Fout = W.shape[1]
    Np = pl.cdiv(N, tm) * tm                         # pad rows to the tile size
    pad = Np - N
    h_pad = jnp.pad(h, ((0, pad), (0, 0)))
    adj_pad = jnp.pad(adj.astype(jnp.float32), ((0, pad), (0, pad)))

    # attn_fc weight split: first Fout entries multiply the src z, last Fout the dst z.
    A = jnp.stack([a_vec[:Fout], a_vec[Fout:]], axis=1)  # (Fout, 2) = [a_src | a_dst]

    z_pad, sd_pad = fused_projection(h_pad, W, A, tm=tm)
    s_row = sd_pad[:, 0].reshape(1, Np)              # tiny (N,)-vector reshape only
    d_col = sd_pad[:, 1].reshape(Np, 1)

    out_pad = masked_attention(d_col, s_row, z_pad, adj_pad, tm=tm)
    return out_pad[:N]


# ---------------------------------------------------------------------------
# Pure-JAX reference (same math as the DGL message passing)
# ---------------------------------------------------------------------------
def reference(h, adj, W, a_vec):
    Fout = W.shape[1]
    z = h @ W
    s = z @ a_vec[:Fout]                             # (N,) src contribution
    d = z @ a_vec[Fout:]                             # (N,) dst contribution
    pre = d[:, None] + s[None, :]                    # e[dst, src]
    e = jnp.where(pre > 0, pre, NEG_SLOPE * pre)
    e = jnp.where(adj > 0, e, -jnp.inf)
    alpha = jax.nn.softmax(e, axis=-1)
    return alpha @ z


if __name__ == "__main__":
    N, in_dim, out_dim = 300, 32, 16                 # small, exercises the pad/mask path

    key = jax.random.PRNGKey(0)
    kw, ka, kh, kg = jax.random.split(key, 4)

    # xavier_normal_ with gain = calculate_gain('relu') = sqrt(2)
    gain = math.sqrt(2.0)
    w_std = gain * math.sqrt(2.0 / (in_dim + out_dim))
    a_std = gain * math.sqrt(2.0 / (2 * out_dim + 1))
    W = w_std * jax.random.normal(kw, (in_dim, out_dim), jnp.float32)
    a_vec = a_std * jax.random.normal(ka, (2 * out_dim,), jnp.float32)

    h = jax.random.normal(kh, (N, in_dim), jnp.float32)

    # Random directed graph with self-loops so every node has >= 1 in-edge
    # (avoids DGL's empty-mailbox corner case).
    adj = (jax.random.uniform(kg, (N, N)) < 0.1).astype(jnp.float32)
    adj = jnp.maximum(adj, jnp.eye(N, dtype=jnp.float32))

    out = jax.block_until_ready(gat_layer(h, adj, W, a_vec))
    ref = jax.block_until_ready(reference(h, adj, W, a_vec))
    np.testing.assert_allclose(np.asarray(out), np.asarray(ref), rtol=2e-3, atol=2e-3)

    print("KERNEL_OK")
</pallas_src>

<mosaic_0001>
module attributes {stable_mosaic.version = 11 : i64} {
  func.func @_proj_kernel(%arg0: i32, %arg1: memref<128x32xf32, #tpu.memory_space<vmem>>, %arg2: memref<32x16xf32, #tpu.memory_space<vmem>>, %arg3: memref<16x2xf32, #tpu.memory_space<vmem>>, %arg4: memref<128x16xf32, #tpu.memory_space<vmem>>, %arg5: memref<128x2xf32, #tpu.memory_space<vmem>>) attributes {dimension_semantics = [#tpu.dimension_semantics<parallel>], iteration_bounds = array<i64: 3>, scalar_prefetch = 0 : i64, scratch_operands = 0 : i64, tpu.core_type = #tpu.core_type<tc>, window_params = [{transform_indices = @transform_0, window_bounds = array<i64: 128, 32>}, {pipeline_mode = #tpu.pipeline_mode<synchronous>, transform_indices = @transform_1, window_bounds = array<i64: 32, 16>}, {pipeline_mode = #tpu.pipeline_mode<synchronous>, transform_indices = @transform_2, window_bounds = array<i64: 16, 2>}, {transform_indices = @transform_3, window_bounds = array<i64: 128, 16>}, {transform_indices = @transform_4, window_bounds = array<i64: 128, 2>}]} {
    %c0 = arith.constant 0 : index
    %c0_0 = arith.constant 0 : index
    %0 = vector.load %arg1[%c0, %c0_0] : memref<128x32xf32, #tpu.memory_space<vmem>>, vector<128x32xf32>
    %c0_1 = arith.constant 0 : index
    %c0_2 = arith.constant 0 : index
    %1 = vector.load %arg2[%c0_1, %c0_2] : memref<32x16xf32, #tpu.memory_space<vmem>>, vector<32x16xf32>
    %cst = arith.constant dense<0.000000e+00> : vector<128x16xf32>
    %2 = tpu.matmul %0, %1, %cst {dimension_numbers = #tpu.dot_dimension_numbers<[1], [0], [0], [1], [0, 0, 1, 1], [], []>} : vector<128x32xf32>, vector<32x16xf32>, vector<128x16xf32> -> vector<128x16xf32>
    %c0_3 = arith.constant 0 : index
    %c0_4 = arith.constant 0 : index
    %3 = vector.load %arg4[%c0_3, %c0_4] : memref<128x16xf32, #tpu.memory_space<vmem>>, vector<128x16xf32>
    tpu.vector_store %arg4[%c0_3, %c0_4], %2 {strides = array<i32>} : memref<128x16xf32, #tpu.memory_space<vmem>>, vector<128x16xf32>,
    %c0_5 = arith.constant 0 : index
    %c0_6 = arith.constant 0 : index
    %4 = vector.load %arg3[%c0_5, %c0_6] : memref<16x2xf32, #tpu.memory_space<vmem>>, vector<16x2xf32>
    %cst_7 = arith.constant dense<0.000000e+00> : vector<128x2xf32>
    %5 = tpu.matmul %2, %4, %cst_7 {dimension_numbers = #tpu.dot_dimension_numbers<[1], [0], [0], [1], [0, 0, 1, 1], [], []>} : vector<128x16xf32>, vector<16x2xf32>, vector<128x2xf32> -> vector<128x2xf32>
    %c0_8 = arith.constant 0 : index
    %c0_9 = arith.constant 0 : index
    %6 = vector.load %arg5[%c0_8, %c0_9] : memref<128x2xf32, #tpu.memory_space<vmem>>, vector<128x2xf32>
    tpu.vector_store %arg5[%c0_8, %c0_9], %5 {strides = array<i32>} : memref<128x2xf32, #tpu.memory_space<vmem>>, vector<128x2xf32>,
    return
  }
  func.func @transform_0(%arg0: i32) -> (i32, i32) {
    %c0_i32 = arith.constant 0 : i32
    %c0_i32_0 = arith.constant 0 : i32
    return %arg0, %c0_i32 : i32, i32
  }
  func.func @transform_1(%arg0: i32) -> (i32, i32) {
    %c0_i32 = arith.constant 0 : i32
    %c0_i32_0 = arith.constant 0 : i32
    %c0_i32_1 = arith.constant 0 : i32
    return %c0_i32, %c0_i32_0 : i32, i32
  }
  func.func @transform_2(%arg0: i32) -> (i32, i32) {
    %c0_i32 = arith.constant 0 : i32
    %c0_i32_0 = arith.constant 0 : i32
    %c0_i32_1 = arith.constant 0 : i32
    return %c0_i32, %c0_i32_0 : i32, i32
  }
  func.func @transform_3(%arg0: i32) -> (i32, i32) {
    %c0_i32 = arith.constant 0 : i32
    %c0_i32_0 = arith.constant 0 : i32
    return %arg0, %c0_i32 : i32, i32
  }
  func.func @transform_4(%arg0: i32) -> (i32, i32) {
    %c0_i32 = arith.constant 0 : i32
    %c0_i32_0 = arith.constant 0 : i32
    return %arg0, %c0_i32 : i32, i32
  }
}

</mosaic_0001>

<llo_original>
// kernel: tpu_custom_call.1
$region0: #{tpu_custom_call.1}
  #allocation0 [shape = 'u32[]', space=smem, size = 0x4, offset = 0x4, fixed_abs, tag = 'smem constant byte address 0x4 - core index']
  #allocation1 [shape = 'u32[72,128]{1,0:T(1,128)}', space=vmem, size = 0x9000, scoped, tag = 'internal scratch']
  %s0 = inlined_call_operand.vmem [shape: f32[384,32], index: 0, kind: input, shape index: {}]
  %s1 = inlined_call_operand.vmem [shape: f32[32,16], index: 1, kind: input, shape index: {}]
  %s2 = inlined_call_operand.vmem [shape: f32[16,2], index: 2, kind: input, shape index: {}]
  %s3 = inlined_call_operand.vmem [shape: f32[384,16], index: 3, kind: output, shape index: {0}]
  %s4 = inlined_call_operand.vmem [shape: f32[384,2], index: 4, kind: output, shape index: {1}]
  %5 = xla_tuple %s3, %s4
  %s6 = sld [smem:[#allocation0]]
  $region53: #{tpu_custom_call.1} parent=0
    _
  %s8 = ssub.s32 1, %s6
  %s9 = scalar_select 0, %s8, %s6
  loop: start=0, step=1, limit=5
  $region2: #{tpu_custom_call.1} parent=0 // loop_pre_header
    _
  $region3: #{tpu_custom_call.1} parent=0 // loop_header
    %s11 = sphi 0, %s15
    %p12 = scmp.ge.s32.totalorder %s11, 5
    %s21 = sphi 0, %s23
    %s24 = sphi 0, %s21
    %s25 = sphi 0, %s24
    %s41 = sphi 0, %s25
    %s45 = sphi 0, %s45
    %s47 = sphi 0, %s45
    %s48 = sphi 0, %s47
    %s62 = sphi 0, %s48
    %s66 = sphi 0, %s66
    %s68 = sphi 0, %s66
    %s69 = sphi 0, %s68
    %s83 = sphi 0, %s69
    %s89 = sphi 0, %s91
    %s92 = sphi 0, %s89
    %s93 = sphi 0, %s92
    %s109 = sphi 0, %s93
    %s115 = sphi 0, %s117
    %s118 = sphi 0, %s115
    %s119 = sphi 0, %s118
    %s135 = sphi 0, %s119
  $region4: #{tpu_custom_call.1} parent=0 // loop_header_branch
    %14 = sbr.rel (%p12) target = $region8
  $region5: #{tpu_custom_call.1} parent=0 // loop_body
    %s16 = ssub.s32 %s11, 1
    %s17 = ssub.s32 %s11, 2
    %s18 = sadd.s32 %s11, 1
    %s19 = ssub.s32 %s11, %s18
    %p20 = scmp.eq.s32.totalorder %s19, 0
    %s22 = sadd.s32 %s21, 1
    %s23 = scalar_select %p20, %s21, %s22
    %p26 = pneg %p20
    %p27 = scmp.eq.s32.totalorder %s11, 2
    %p28 = por %p26, %p27
    %p29 = scmp.ne.s32.totalorder %s21, %s24
    %p30 = scmp.eq.s32.totalorder %s11, 0
    %p31 = por %p29, %p30
    %p32 = scmp.ne.s32.totalorder %s21, %s24
    %p33 = scmp.eq.s32.totalorder %s16, 2
    %p34 = por %p32, %p33
    %p35 = scmp.ne.s32.totalorder %s24, %s25
    %p36 = scmp.eq.s32.totalorder %s16, 0
    %p37 = por %p35, %p36
    %p38 = scmp.ne.s32.totalorder %s24, %s25
    %p39 = scmp.eq.s32.totalorder %s17, 2
    %p40 = por %p38, %p39
    %p42 = scmp.ne.s32.totalorder %s25, %s41
    %p43 = scmp.eq.s32.totalorder %s17, 0
    %p44 = por %p42, %p43
    %s46 = sadd.s32 %s45, 1
    %p49 = scmp.eq.s32.totalorder %s11, 2
    %p50 = scmp.ne.s32.totalorder %s45, %s47
    %p51 = scmp.eq.s32.totalorder %s11, 0
    %p52 = por %p50, %p51
    %p53 = scmp.ne.s32.totalorder %s45, %s47
    %p54 = scmp.eq.s32.totalorder %s16, 2
    %p55 = por %p53, %p54
    %p56 = scmp.ne.s32.totalorder %s47, %s48
    %p57 = scmp.eq.s32.totalorder %s16, 0
    %p58 = por %p56, %p57
    %p59 = scmp.ne.s32.totalorder %s47, %s48
    %p60 = scmp.eq.s32.totalorder %s17, 2
    %p61 = por %p59, %p60
    %p63 = scmp.ne.s32.totalorder %s48, %s62
    %p64 = scmp.eq.s32.totalorder %s17, 0
    %p65 = por %p63, %p64
    %s67 = sadd.s32 %s66, 1
    %p70 = scmp.eq.s32.totalorder %s11, 2
    %p71 = scmp.ne.s32.totalorder %s66, %s68
    %p72 = scmp.eq.s32.totalorder %s11, 0
    %p73 = por %p71, %p72
    %p74 = scmp.ne.s32.totalorder %s66, %s68
    %p75 = scmp.eq.s32.totalorder %s16, 2
    %p76 = por %p74, %p75
    %p77 = scmp.ne.s32.totalorder %s68, %s69
    %p78 = scmp.eq.s32.totalorder %s16, 0
    %p79 = por %p77, %p78
    %p80 = scmp.ne.s32.totalorder %s68, %s69
    %p81 = scmp.eq.s32.totalorder %s17, 2
    %p82 = por %p80, %p81
    %p84 = scmp.ne.s32.totalorder %s69, %s83
    %p85 = scmp.eq.s32.totalorder %s17, 0
    %p86 = por %p84, %p85
    %s87 = ssub.s32 %s11, %s18
    %p88 = scmp.eq.s32.totalorder %s87, 0
    %s90 = sadd.s32 %s89, 1
    %s91 = scalar_select %p88, %s89, %s90
    %p94 = pneg %p88
    %p95 = scmp.eq.s32.totalorder %s11, 2
    %p96 = por %p94, %p95
    %p97 = scmp.ne.s32.totalorder %s89, %s92
    %p98 = scmp.eq.s32.totalorder %s11, 0
    %p99 = por %p97, %p98
    %p100 = scmp.ne.s32.totalorder %s89, %s92
    %p101 = scmp.eq.s32.totalorder %s16, 2
    %p102 = por %p100, %p101
    %p103 = scmp.ne.s32.totalorder %s92, %s93
    %p104 = scmp.eq.s32.totalorder %s16, 0
    %p105 = por %p103, %p104
    %p106 = scmp.ne.s32.totalorder %s92, %s93
    %p107 = scmp.eq.s32.totalorder %s17, 2
    %p108 = por %p106, %p107
    %p110 = scmp.ne.s32.totalorder %s93, %s109
    %p111 = scmp.eq.s32.totalorder %s17, 0
    %p112 = por %p110, %p111
    %s113 = ssub.s32 %s11, %s18
    %p114 = scmp.eq.s32.totalorder %s113, 0
    %s116 = sadd.s32 %s115, 1
    %s117 = scalar_select %p114, %s115, %s116
    %p120 = pneg %p114
    %p121 = scmp.eq.s32.totalorder %s11, 2
    %p122 = por %p120, %p121
    %p123 = scmp.ne.s32.totalorder %s115, %s118
    %p124 = scmp.eq.s32.totalorder %s11, 0
    %p125 = por %p123, %p124
    %p126 = scmp.ne.s32.totalorder %s115, %s118
    %p127 = scmp.eq.s32.totalorder %s16, 2
    %p128 = por %p126, %p127
    %p129 = scmp.ne.s32.totalorder %s118, %s119
    %p130 = scmp.eq.s32.totalorder %s16, 0
    %p131 = por %p129, %p130
    %p132 = scmp.ne.s32.totalorder %s118, %s119
    %p133 = scmp.eq.s32.totalorder %s17, 2
    %p134 = por %p132, %p133
    %p136 = scmp.ne.s32.totalorder %s119, %s135
    %p137 = scmp.eq.s32.totalorder %s17, 0
    %p138 = por %p136, %p137
    %p139 = scmp.le.s32.totalorder 1, %s11
    %p140 = scmp.lt.s32.totalorder %s11, 4
    %p141 = pnand %p139, %p140
    %p142 = pneg %p141
    // Predicated region
    $region9: #{tpu_custom_call.1} parent=5 // pred_check
      _
    $region10: #{tpu_custom_call.1} parent=5 // pred_check_branch
      %144 = sbr.rel (%p141) target = $region12
    $region11: #{tpu_custom_call.1} parent=5 // pred_region
      %s145 = ssub.s32 %s11, 1
      // Predicated region
      $region13: #{tpu_custom_call.1} parent=11 // pred_check
        %p146 = pneg %p58
      $region14: #{tpu_custom_call.1} parent=11 // pred_check_branch
        %148 = sbr.rel (%p146) target = $region16
      $region15: #{tpu_custom_call.1} parent=11 // pred_region
        _
      $region16: #{tpu_custom_call.1} parent=11 // pred_fallthru
        _
      // Predicated region
      $region17: #{tpu_custom_call.1} parent=11 // pred_check
        %p149 = pneg %p79
      $region18: #{tpu_custom_call.1} parent=11 // pred_check_branch
        %151 = sbr.rel (%p149) target = $region20
      $region19: #{tpu_custom_call.1} parent=11 // pred_region
        _
      $region20: #{tpu_custom_call.1} parent=11 // pred_fallthru
        _
    $region12: #{tpu_custom_call.1} parent=5 // pred_fallthru
      _
    %p152 = scmp.lt.s32.totalorder %s11, 3
    // Predicated region
    $region21: #{tpu_custom_call.1} parent=5 // pred_check
      %p153 = pneg %p152
    $region22: #{tpu_custom_call.1} parent=5 // pred_check_branch
      %155 = sbr.rel (%p153) target = $region24
    $region23: #{tpu_custom_call.1} parent=5 // pred_region
      // Predicated region
      $region25: #{tpu_custom_call.1} parent=23 // pred_check
        %p156 = pneg %p31
      $region26: #{tpu_custom_call.1} parent=23 // pred_check_branch
        %158 = sbr.rel (%p156) target = $region28
      $region27: #{tpu_custom_call.1} parent=23 // pred_region
        %s159 = smul.u32 16, %s11
        %p160 = scmp.lt.s32.totalorder %s159, 47
        %s161 = scalar_select %p160, %s159, 47
        %s162 = smul.addr %s161, 8
        %s163 = scalar_lea.vmem %s0, %s162
        %s164 = smul.u32 16, %s11
      $region28: #{tpu_custom_call.1} parent=23 // pred_fallthru
        _
    $region24: #{tpu_custom_call.1} parent=5 // pred_fallthru
      _
    %p165 = scmp.le.s32.totalorder 1, %s11
    %p166 = scmp.lt.s32.totalorder %s11, 4
    %p167 = pnand %p165, %p166
    %p168 = pneg %p167
    // Predicated region
    $region29: #{tpu_custom_call.1} parent=5 // pred_check
      _
    $region30: #{tpu_custom_call.1} parent=5 // pred_check_branch
      %170 = sbr.rel (%p167) target = $region32
    $region31: #{tpu_custom_call.1} parent=5 // pred_region
      %s171 = ssub.s32 %s11, 1
      %s172 = smul.u32 16, %s16
      %p173 = scmp.lt.s32.totalorder %s172, 47
      %s174 = scalar_select %p173, %s172, 47
      %s175 = smul.addr %s174, 8
      %s176 = scalar_lea.vmem %s0, %s175
      %p177 = pneg %p37
      %p178 = pneg %p34
      %p179 = pneg %p58
      %p180 = pneg %p55
      %p181 = pneg %p79
      %p182 = pneg %p76
      %p183 = pneg %p105
      %p184 = pneg %p102
      %s185 = smul.u32 16, %s16
      %p186 = scmp.lt.s32.totalorder %s185, 47
      %s187 = scalar_select %p186, %s185, 47
      %s188 = smul.addr %s187, 8
      %s189 = scalar_lea.vmem %s3, %s188
      %p190 = pneg %p131
      %p191 = pneg %p128
      %s192 = smul.u32 16, %s16
      %p193 = scmp.lt.s32.totalorder %s192, 47
      %s194 = scalar_select %p193, %s192, 47
      %s195 = smul.addr %s194, 8
      %s196 = scalar_lea.vmem %s4, %s195
      %s197 = smul.u32 16, %s16
      %p198 = scmp.lt.s32.totalorder %s197, 47
      %s199 = scalar_select %p198, %s197, 47
      %s200 = smul.addr %s199, 8
      %s201 = scalar_lea.vmem %s0, %s200
      %s202 = smul.u32 16, %s16
      %s203 = smul.u32 16, %s16
      %p204 = scmp.lt.s32.totalorder %s203, 47
      %s205 = scalar_select %p204, %s203, 47
      %s206 = smul.addr %s205, 8
      %s207 = scalar_lea.vmem %s3, %s206
      %s208 = smul.u32 16, %s16
      %s209 = smul.u32 16, %s16
      %p210 = scmp.lt.s32.totalorder %s209, 47
      %s211 = scalar_select %p210, %s209, 47
      %s212 = smul.addr %s211, 8
      %s213 = scalar_lea.vmem %s4, %s212
      %s214 = smul.u32 16, %s16
      %v215 = vld [vmem:[%s201] sm:$0xff]
      %v216 = vld [vmem:[%s201 + $0x8] sm:$0xff]
      %v217 = vld [vmem:[%s201 + $0x10] sm:$0xff]
      %v218 = vld [vmem:[%s201 + $0x18] sm:$0xff]
      %v219 = vld [vmem:[%s201 + $0x20] sm:$0xff]
      %v220 = vld [vmem:[%s201 + $0x28] sm:$0xff]
      %v221 = vld [vmem:[%s201 + $0x30] sm:$0xff]
      %v222 = vld [vmem:[%s201 + $0x38] sm:$0xff]
      %v223 = vld [vmem:[%s201 + $0x40] sm:$0xff]
      %v224 = vld [vmem:[%s201 + $0x48] sm:$0xff]
      %v225 = vld [vmem:[%s201 + $0x50] sm:$0xff]
      %v226 = vld [vmem:[%s201 + $0x58] sm:$0xff]
      %v227 = vld [vmem:[%s201 + $0x60] sm:$0xff]
      %v228 = vld [vmem:[%s201 + $0x68] sm:$0xff]
      %v229 = vld [vmem:[%s201 + $0x70] sm:$0xff]
      %v230 = vld [vmem:[%s201 + $0x78] sm:$0xff]
      %v231 = vld [vmem:[%s1] sm:$0xff]
      %v232 = vld [vmem:[%s1 + $0x8] sm:$0xff]
      %v233 = vld [vmem:[%s1 + $0x10] sm:$0xff]
      %v234 = vld [vmem:[%s1 + $0x18] sm:$0xff]
      %vm235 = vcmask 261120
      %v237 = vsel %vm235, %v215, 0
      %v240 = vsel %vm235, %v216, 0
      %v243 = vsel %vm235, %v217, 0
      %v246 = vsel %vm235, %v218, 0
      %v249 = vsel %vm235, %v219, 0
      %v252 = vsel %vm235, %v220, 0
      %v255 = vsel %vm235, %v221, 0
      %v258 = vsel %vm235, %v222, 0
      %v261 = vsel %vm235, %v223, 0
      %v264 = vsel %vm235, %v224, 0
      %v267 = vsel %vm235, %v225, 0
      %v270 = vsel %vm235, %v226, 0
      %v273 = vsel %vm235, %v227, 0
      %v276 = vsel %vm235, %v228, 0
      %v279 = vsel %vm235, %v229, 0
      %v282 = vsel %vm235, %v230, 0
      %284 = vmatpush.msra.mxu0 0.0
      %285 = vmatpush.msra.mxu0 0.0
      %286 = vmatpush.msra.mxu0 0.0
      %287 = vmatpush.msra.mxu0 0.0
      %288 = vmatpush.msra.mxu0 0.0
      %289 = vmatpush.msra.mxu0 0.0
      %290 = vmatpush.msra.mxu0 0.0
      %291 = vmatpush.msra.mxu0 0.0
      %292 = vmatpush.msra.mxu0 0.0
      %293 = vmatpush.msra.mxu0 0.0
      %294 = vmatpush.msra.mxu0 0.0
      %295 = vmatpush.msra.mxu0 0.0
      %296 = vmatpush.msra.mxu0 %v234
      %297 = vmatpush.msra.mxu0 %v233
      %298 = vmatpush.msra.mxu0 %v232
      %299 = vmatpush.msra.mxu0 %v231
      %300 = vmatmul.f32.gmra.mxu0 %v237
      %v301 = vpop.f32.mrf.mxu0
      %v302 = vadd.f32 0.0, %v301
      %303 = vmatmul.f32.gmra.mxu0 %v240
      %v304 = vpop.f32.mrf.mxu0
      %v305 = vadd.f32 0.0, %v304
      %306 = vmatmul.f32.gmra.mxu0 %v243
      %v307 = vpop.f32.mrf.mxu0
      %v308 = vadd.f32 0.0, %v307
      %309 = vmatmul.f32.gmra.mxu0 %v246
      %v310 = vpop.f32.mrf.mxu0
      %v311 = vadd.f32 0.0, %v310
      %312 = vmatmul.f32.gmra.mxu0 %v249
      %v313 = vpop.f32.mrf.mxu0
      %v314 = vadd.f32 0.0, %v313
      %315 = vmatmul.f32.gmra.mxu0 %v252
      %v316 = vpop.f32.mrf.mxu0
      %v317 = vadd.f32 0.0, %v316
      %318 = vmatmul.f32.gmra.mxu0 %v255
      %v319 = vpop.f32.mrf.mxu0
      %v320 = vadd.f32 0.0, %v319
      %321 = vmatmul.f32.gmra.mxu0 %v258
      %v322 = vpop.f32.mrf.mxu0
      %v323 = vadd.f32 0.0, %v322
      %324 = vmatmul.f32.gmra.mxu0 %v261
      %v325 = vpop.f32.mrf.mxu0
      %v326 = vadd.f32 0.0, %v325
      %327 = vmatmul.f32.gmra.mxu0 %v264
      %v328 = vpop.f32.mrf.mxu0
      %v329 = vadd.f32 0.0, %v328
      %330 = vmatmul.f32.gmra.mxu0 %v267
      %v331 = vpop.f32.mrf.mxu0
      %v332 = vadd.f32 0.0, %v331
      %333 = vmatmul.f32.gmra.mxu0 %v270
      %v334 = vpop.f32.mrf.mxu0
      %v335 = vadd.f32 0.0, %v334
      %336 = vmatmul.f32.gmra.mxu0 %v273
      %v337 = vpop.f32.mrf.mxu0
      %v338 = vadd.f32 0.0, %v337
      %339 = vmatmul.f32.gmra.mxu0 %v276
      %v340 = vpop.f32.mrf.mxu0
      %v341 = vadd.f32 0.0, %v340
      %342 = vmatmul.f32.gmra.mxu0 %v279
      %v343 = vpop.f32.mrf.mxu0
      %v344 = vadd.f32 0.0, %v343
      %345 = vmatmul.f32.gmra.mxu0 %v282
      %v346 = vpop.f32.mrf.mxu0
      %v347 = vadd.f32 0.0, %v346
      %348 = vdwg.mxu0
      %vm349 = vcmask 130048
      %350 = vst.msk [vmem:[%s207] sm:$0xff] %vm349, %v302
      %351 = vst.msk [vmem:[%s207 + $0x8] sm:$0xff] %vm349, %v305
      %352 = vst.msk [vmem:[%s207 + $0x10] sm:$0xff] %vm349, %v308
      %353 = vst.msk [vmem:[%s207 + $0x18] sm:$0xff] %vm349, %v311
      %354 = vst.msk [vmem:[%s207 + $0x20] sm:$0xff] %vm349, %v314
      %355 = vst.msk [vmem:[%s207 + $0x28] sm:$0xff] %vm349, %v317
      %356 = vst.msk [vmem:[%s207 + $0x30] sm:$0xff] %vm349, %v320
      %357 = vst.msk [vmem:[%s207 + $0x38] sm:$0xff] %vm349, %v323
      %358 = vst.msk [vmem:[%s207 + $0x40] sm:$0xff] %vm349, %v326
      %359 = vst.msk [vmem:[%s207 + $0x48] sm:$0xff] %vm349, %v329
      %360 = vst.msk [vmem:[%s207 + $0x50] sm:$0xff] %vm349, %v332
      %361 = vst.msk [vmem:[%s207 + $0x58] sm:$0xff] %vm349, %v335
      %362 = vst.msk [vmem:[%s207 + $0x60] sm:$0xff] %vm349, %v338
      %363 = vst.msk [vmem:[%s207 + $0x68] sm:$0xff] %vm349, %v341
      %364 = vst.msk [vmem:[%s207 + $0x70] sm:$0xff] %vm349, %v344
      %365 = vst.msk [vmem:[%s207 + $0x78] sm:$0xff] %vm349, %v347
      %v366 = vld [vmem:[%s2] sm:$0xff]
      %v367 = vld [vmem:[%s2 + $0x8] sm:$0xff]
      %v369 = vsel %vm349, %v302, 0
      %v372 = vsel %vm349, %v305, 0
      %v375 = vsel %vm349, %v308, 0
      %v378 = vsel %vm349, %v311, 0
      %v381 = vsel %vm349, %v314, 0
      %v384 = vsel %vm349, %v317, 0
      %v387 = vsel %vm349, %v320, 0
      %v390 = vsel %vm349, %v323, 0
      %v393 = vsel %vm349, %v326, 0
      %v396 = vsel %vm349, %v329, 0
      %v399 = vsel %vm349, %v332, 0
      %v402 = vsel %vm349, %v335, 0
      %v405 = vsel %vm349, %v338, 0
      %v408 = vsel %vm349, %v341, 0
      %v411 = vsel %vm349, %v344, 0
      %v414 = vsel %vm349, %v347, 0
      %416 = vmatpush.msra.mxu0 0.0
      %417 = vmatpush.msra.mxu0 0.0
      %418 = vmatpush.msra.mxu0 0.0
      %419 = vmatpush.msra.mxu0 0.0
      %420 = vmatpush.msra.mxu0 0.0
      %421 = vmatpush.msra.mxu0 0.0
      %422 = vmatpush.msra.mxu0 0.0
      %423 = vmatpush.msra.mxu0 0.0
      %424 = vmatpush.msra.mxu0 0.0
      %425 = vmatpush.msra.mxu0 0.0
      %426 = vmatpush.msra.mxu0 0.0
      %427 = vmatpush.msra.mxu0 0.0
      %428 = vmatpush.msra.mxu0 0.0
      %429 = vmatpush.msra.mxu0 0.0
      %430 = vmatpush.msra.mxu0 %v367
      %431 = vmatpush.msra.mxu0 %v366
      %432 = vmatmul.f32.gmra.mxu0 %v369
      %v433 = vpop.f32.mrf.mxu0
      %v434 = vadd.f32 0.0, %v433
      %435 = vmatmul.f32.gmra.mxu0 %v372
      %v436 = vpop.f32.mrf.mxu0
      %v437 = vadd.f32 0.0, %v436
      %438 = vmatmul.f32.gmra.mxu0 %v375
      %v439 = vpop.f32.mrf.mxu0
      %v440 = vadd.f32 0.0, %v439
      %441 = vmatmul.f32.gmra.mxu0 %v378
      %v442 = vpop.f32.mrf.mxu0
      %v443 = vadd.f32 0.0, %v442
      %444 = vmatmul.f32.gmra.mxu0 %v381
      %v445 = vpop.f32.mrf.mxu0
      %v446 = vadd.f32 0.0, %v445
      %447 = vmatmul.f32.gmra.mxu0 %v384
      %v448 = vpop.f32.mrf.mxu0
      %v449 = vadd.f32 0.0, %v448
      %450 = vmatmul.f32.gmra.mxu0 %v387
      %v451 = vpop.f32.mrf.mxu0
      %v452 = vadd.f32 0.0, %v451
      %453 = vmatmul.f32.gmra.mxu0 %v390
      %v454 = vpop.f32.mrf.mxu0
      %v455 = vadd.f32 0.0, %v454
      %456 = vmatmul.f32.gmra.mxu0 %v393
      %v457 = vpop.f32.mrf.mxu0
      %v458 = vadd.f32 0.0, %v457
      %459 = vmatmul.f32.gmra.mxu0 %v396
      %v460 = vpop.f32.mrf.mxu0
      %v461 = vadd.f32 0.0, %v460
      %462 = vmatmul.f32.gmra.mxu0 %v399
      %v463 = vpop.f32.mrf.mxu0
      %v464 = vadd.f32 0.0, %v463
      %465 = vmatmul.f32.gmra.mxu0 %v402
      %v466 = vpop.f32.mrf.mxu0
      %v467 = vadd.f32 0.0, %v466
      %468 = vmatmul.f32.gmra.mxu0 %v405
      %v469 = vpop.f32.mrf.mxu0
      %v470 = vadd.f32 0.0, %v469
      %471 = vmatmul.f32.gmra.mxu0 %v408
      %v472 = vpop.f32.mrf.mxu0
      %v473 = vadd.f32 0.0, %v472
      %474 = vmatmul.f32.gmra.mxu0 %v411
      %v475 = vpop.f32.mrf.mxu0
      %v476 = vadd.f32 0.0, %v475
      %477 = vmatmul.f32.gmra.mxu0 %v414
      %v478 = vpop.f32.mrf.mxu0
      %v479 = vadd.f32 0.0, %v478
      %480 = vdwg.mxu0
      %vm481 = vcmask 15360
      %482 = vst.msk [vmem:[%s213] sm:$0xff] %vm481, %v434
      %483 = vst.msk [vmem:[%s213 + $0x8] sm:$0xff] %vm481, %v437
      %484 = vst.msk [vmem:[%s213 + $0x10] sm:$0xff] %vm481, %v440
      %485 = vst.msk [vmem:[%s213 + $0x18] sm:$0xff] %vm481, %v443
      %486 = vst.msk [vmem:[%s213 + $0x20] sm:$0xff] %vm481, %v446
      %487 = vst.msk [vmem:[%s213 + $0x28] sm:$0xff] %vm481, %v449
      %488 = vst.msk [vmem:[%s213 + $0x30] sm:$0xff] %vm481, %v452
      %489 = vst.msk [vmem:[%s213 + $0x38] sm:$0xff] %vm481, %v455
      %490 = vst.msk [vmem:[%s213 + $0x40] sm:$0xff] %vm481, %v458
      %491 = vst.msk [vmem:[%s213 + $0x48] sm:$0xff] %vm481, %v461
      %492 = vst.msk [vmem:[%s213 + $0x50] sm:$0xff] %vm481, %v464
      %493 = vst.msk [vmem:[%s213 + $0x58] sm:$0xff] %vm481, %v467
      %494 = vst.msk [vmem:[%s213 + $0x60] sm:$0xff] %vm481, %v470
      %495 = vst.msk [vmem:[%s213 + $0x68] sm:$0xff] %vm481, %v473
      %496 = vst.msk [vmem:[%s213 + $0x70] sm:$0xff] %vm481, %v476
      %497 = vst.msk [vmem:[%s213 + $0x78] sm:$0xff] %vm481, %v479
      %s498 = smul.u32 16, %s16
      %p499 = scmp.lt.s32.totalorder %s498, 47
      %s500 = scalar_select %p499, %s498, 47
      %s501 = smul.addr %s500, 8
      %s502 = scalar_lea.vmem %s3, %s501
      %s503 = smul.u32 16, %s16
      %p504 = scmp.lt.s32.totalorder %s503, 47
      %s505 = scalar_select %p504, %s503, 47
      %s506 = smul.addr %s505, 8
      %s507 = scalar_lea.vmem %s4, %s506
      // Predicated region
      $region33: #{tpu_custom_call.1} parent=31 // pred_check
        %p508 = pneg %p102
      $region34: #{tpu_custom_call.1} parent=31 // pred_check_branch
        %510 = sbr.rel (%p508) target = $region36
      $region35: #{tpu_custom_call.1} parent=31 // pred_region
        %s511 = smul.u32 16, %s16
      $region36: #{tpu_custom_call.1} parent=31 // pred_fallthru
        _
      // Predicated region
      $region37: #{tpu_custom_call.1} parent=31 // pred_check
        %p512 = pneg %p128
      $region38: #{tpu_custom_call.1} parent=31 // pred_check_branch
        %514 = sbr.rel (%p512) target = $region40
      $region39: #{tpu_custom_call.1} parent=31 // pred_region
        %s515 = smul.u32 16, %s16
      $region40: #{tpu_custom_call.1} parent=31 // pred_fallthru
        _
    $region32: #{tpu_custom_call.1} parent=5 // pred_fallthru
      _
    %p516 = scmp.le.s32.totalorder 2, %s11
    // Predicated region
    $region41: #{tpu_custom_call.1} parent=5 // pred_check
      %p517 = pneg %p516
    $region42: #{tpu_custom_call.1} parent=5 // pred_check_branch
      %519 = sbr.rel (%p517) target = $region44
    $region43: #{tpu_custom_call.1} parent=5 // pred_region
      %s520 = ssub.s32 %s11, 2
      // Predicated region
      $region45: #{tpu_custom_call.1} parent=43 // pred_check
        %p521 = pneg %p108
      $region46: #{tpu_custom_call.1} parent=43 // pred_check_branch
        %523 = sbr.rel (%p521) target = $region48
      $region47: #{tpu_custom_call.1} parent=43 // pred_region
        %s524 = smul.u32 16, %s17
        %p525 = scmp.lt.s32.totalorder %s524, 47
        %s526 = scalar_select %p525, %s524, 47
        %s527 = smul.addr %s526, 8
        %s528 = scalar_lea.vmem %s3, %s527
      $region48: #{tpu_custom_call.1} parent=43 // pred_fallthru
        _
      // Predicated region
      $region49: #{tpu_custom_call.1} parent=43 // pred_check
        %p529 = pneg %p134
      $region50: #{tpu_custom_call.1} parent=43 // pred_check_branch
        %531 = sbr.rel (%p529) target = $region52
      $region51: #{tpu_custom_call.1} parent=43 // pred_region
        %s532 = smul.u32 16, %s17
        %p533 = scmp.lt.s32.totalorder %s532, 47
        %s534 = scalar_select %p533, %s532, 47
        %s535 = smul.addr %s534, 8
        %s536 = scalar_lea.vmem %s4, %s535
      $region52: #{tpu_custom_call.1} parent=43 // pred_fallthru
        _
    $region44: #{tpu_custom_call.1} parent=5 // pred_fallthru
      _
  $region6: #{tpu_custom_call.1} parent=0 // loop_footer
    %s15 = sadd.s32 1, %s11
  $region7: #{tpu_custom_call.1} parent=0 // loop_footer_branch
    %10 = sbr.rel target = $region3
  $region8: #{tpu_custom_call.1} parent=0 // loop_exit
    _

</llo_original>
